<compile_context>
chip_gen: v7x
topology: tpu7x:2x2x1
jax: 0.10.0
libtpu: 0.0.40
codegen_flags: <defaults>
</compile_context>

<pallas_src>
import jax
import jax.numpy as jnp
from jax import lax
from jax.experimental import pallas as pl
from jax.experimental.pallas import tpu as pltpu


def _round_up(x, m):
    return (x + m - 1) // m * m


def cbow_kernel(idx_ref, fused_ref, bias_ref, out_ref):
    """One (TB, V) softmax tile per grid step.

    idx_ref  : (TB, C) int32 -- context indices for this batch tile (VMEM)
    fused_ref: (V, V)  bf16  -- (embedding @ W^T) / C, precomputed in wrapper
    bias_ref : (1, V)  f32   -- nn.Linear bias
    out_ref  : (TB, V) f32   -- softmax scores
    """
    tb, C = idx_ref.shape
    V = fused_ref.shape[0]

    ids = idx_ref[...]                                      # (TB, C) int32
    iota_v = lax.broadcasted_iota(jnp.int32, (tb, V), 1)    # (TB, V) lane iota

    # counts[b, v] = #{c : ids[b, c] == v}.  C is a small static constant, so
    # this fully unrolls into VPU compares/adds.  Start from the first compare
    # (no zeros fill), accumulate in f32 (v5e-safe), cast once for the MXU.
    counts = (iota_v == ids[:, 0:1]).astype(jnp.float32)
    for c in range(1, C):
        counts = counts + (iota_v == ids[:, c:c + 1]).astype(jnp.float32)

    # Single fused MXU matmul:
    #   logits = mean_emb @ W^T + b = (counts / C) @ emb @ W^T + b
    #          = counts @ fused + b            (bf16 operands, f32 accumulation)
    logits = jnp.dot(counts.astype(jnp.bfloat16), fused_ref[...],
                     preferred_element_type=jnp.float32) + bias_ref[...]

    # Numerically stable softmax over dim=1 (all f32); reciprocal -> EUP slot.
    m = jnp.max(logits, axis=1, keepdims=True)
    e = jnp.exp(logits - m)
    denom = jnp.sum(e, axis=1, keepdims=True)
    out_ref[...] = (e * pl.reciprocal(denom, approx=True)).astype(out_ref.dtype)


def cbow_forward(context_items, emb_table, lin_w, lin_b, *, tb=None):
    """context_items: (B, C) int; emb_table: (V, D); lin_w: (V, D); lin_b: (V,)."""
    B, C = context_items.shape
    V, D = emb_table.shape
    assert lin_w.shape == (V, D) and lin_b.shape == (V,)

    # Weight-only precompute (reusable across calls): fold the 1/C mean and the
    # linear layer into one (V, V) table; bf16 for the native MXU path.
    fused = (jnp.dot(emb_table, lin_w.T, preferred_element_type=jnp.float32)
             * (1.0 / C)).astype(jnp.bfloat16)
    bias2d = lin_b.reshape(1, V).astype(jnp.float32)

    # Batch tile: large B -> fill the MXU (256 on v6e/v7x-class tiles); small B
    # -> split into >= 2 grid steps so "parallel" shards across both v7x TCs.
    if tb is None:
        if B >= 512:
            tb = 256
        elif B >= 256:
            tb = 128
        else:
            tb = max(8, _round_up(pl.cdiv(B, 2), 8))
    b_pad = _round_up(B, tb)

    idx = context_items.astype(jnp.int32)
    if b_pad != B:
        idx = jnp.pad(idx, ((0, b_pad - B), (0, 0)))        # padded rows use id 0

    # Scoped-VMEM budget from the actual buffers (pipeline double-buffers each
    # operand); generous headroom, capped under v7x's 64 MiB physical VMEM.
    vmem_needed = (2 * V * V * 2                  # fused table (bf16) x2 bufs
                   + 2 * tb * V * 4               # output tile x2
                   + 2 * tb * max(C, 128) * 4     # idx tile x2 (lane-padded)
                   + 2 * 8 * max(V, 128) * 4      # bias tile x2 (sublane-padded)
                   + 6 * tb * V * 4)              # counts/logits intermediates
    vmem_limit = min(max(int(vmem_needed * 1.5), 16 << 20), 64 << 20)

    grid_spec = pltpu.PrefetchScalarGridSpec(
        num_scalar_prefetch=0,
        grid=(b_pad // tb,),
        in_specs=[
            pl.BlockSpec((tb, C), lambda i: (i, 0)),   # context-index tile
            pl.BlockSpec((V, V), lambda i: (0, 0)),    # fused table (resident)
            pl.BlockSpec((1, V), lambda i: (0, 0)),    # bias (resident)
        ],
        out_specs=pl.BlockSpec((tb, V), lambda i: (i, 0)),
    )

    out = pl.pallas_call(
        cbow_kernel,
        out_shape=jax.ShapeDtypeStruct((b_pad, V), jnp.float32),
        grid_spec=grid_spec,
        compiler_params=pltpu.CompilerParams(
            dimension_semantics=("parallel",),        # batch tiles shard across TCs
            vmem_limit_bytes=vmem_limit),
    )(idx, fused, bias2d)
    return out[:B]


def cbow_reference(context_items, emb_table, lin_w, lin_b):
    ctx = jnp.take(emb_table, context_items, axis=0)          # (B, C, D)
    mean_emb = jnp.mean(ctx, axis=1)                          # (B, D)
    logits = mean_emb @ lin_w.T + lin_b                       # (B, V)
    return jax.nn.softmax(logits, axis=1)


if __name__ == "__main__":
    B, C = 16, 4         # batch_size, context_size
    V, D = 128, 32       # num_items, embedding_dim

    key = jax.random.PRNGKey(0)
    k_idx, k_emb, k_w, k_b = jax.random.split(key, 4)

    # Deterministic synthetic parameters (shapes from CBOWModel.__init__)
    context_items = jax.random.randint(k_idx, (B, C), 0, V, dtype=jnp.int32)
    emb_table = jax.random.normal(k_emb, (V, D), dtype=jnp.float32)          # nn.Embedding weight
    bound = 1.0 / (D ** 0.5)
    lin_w = jax.random.uniform(k_w, (V, D), jnp.float32, -bound, bound)      # nn.Linear weight
    lin_b = jax.random.uniform(k_b, (V,), jnp.float32, -bound, bound)        # nn.Linear bias

    # Default tb heuristic -> tb=8, grid=(2,): exercises multi-step pipelining
    # and both TensorCores on v7x.
    out = cbow_forward(context_items, emb_table, lin_w, lin_b)
    out = jax.block_until_ready(out)

    ref = cbow_reference(context_items, emb_table, lin_w, lin_b)
    assert out.shape == (B, V)
    # bf16 fused weight table + approx EUP reciprocal in the softmax -> relaxed
    # tolerance vs the exact f32 reference.
    assert jnp.allclose(out, ref, atol=3e-3, rtol=3e-2), "mismatch vs reference"

    print("KERNEL_OK")
</pallas_src>

<mosaic_0001>
module attributes {stable_mosaic.version = 11 : i64} {
  func.func @cbow_kernel(%arg0: i32, %arg1: memref<8x4xi32, #tpu.memory_space<vmem>>, %arg2: memref<128x128xbf16, #tpu.memory_space<vmem>>, %arg3: memref<1x128xf32, #tpu.memory_space<vmem>>, %arg4: memref<8x128xf32, #tpu.memory_space<vmem>>) attributes {dimension_semantics = [#tpu.dimension_semantics<parallel>], iteration_bounds = array<i64: 2>, scalar_prefetch = 0 : i64, scratch_operands = 0 : i64, tpu.core_type = #tpu.core_type<tc>, window_params = [{transform_indices = @transform_0, window_bounds = array<i64: 8, 4>}, {pipeline_mode = #tpu.pipeline_mode<synchronous>, transform_indices = @transform_1, window_bounds = array<i64: 128, 128>}, {pipeline_mode = #tpu.pipeline_mode<synchronous>, transform_indices = @transform_2, window_bounds = array<i64: 1, 128>}, {transform_indices = @transform_3, window_bounds = array<i64: 8, 128>}]} {
    %c0 = arith.constant 0 : index
    %c0_0 = arith.constant 0 : index
    %0 = vector.load %arg1[%c0, %c0_0] : memref<8x4xi32, #tpu.memory_space<vmem>>, vector<8x4xi32>
    %1 = tpu.iota {dimensions = array<i32: 1>} : vector<8x128xi32>
    %2 = vector.extract_strided_slice %0 {offsets = [0, 0], sizes = [8, 1], strides = [1, 1]} : vector<8x4xi32> to vector<8x1xi32>
    %3 = vector.broadcast %2 : vector<8x1xi32> to vector<8x128xi32>
    %4 = arith.cmpi eq, %1, %3 : vector<8x128xi32>
    %5 = arith.extui %4 : vector<8x128xi1> to vector<8x128xi32>
    %6 = arith.sitofp %5 : vector<8x128xi32> to vector<8x128xf32>
    %7 = vector.extract_strided_slice %0 {offsets = [0, 1], sizes = [8, 1], strides = [1, 1]} : vector<8x4xi32> to vector<8x1xi32>
    %8 = vector.broadcast %7 : vector<8x1xi32> to vector<8x128xi32>
    %9 = arith.cmpi eq, %1, %8 : vector<8x128xi32>
    %10 = arith.extui %9 : vector<8x128xi1> to vector<8x128xi32>
    %11 = arith.sitofp %10 : vector<8x128xi32> to vector<8x128xf32>
    %12 = arith.addf %6, %11 : vector<8x128xf32>
    %13 = vector.extract_strided_slice %0 {offsets = [0, 2], sizes = [8, 1], strides = [1, 1]} : vector<8x4xi32> to vector<8x1xi32>
    %14 = vector.broadcast %13 : vector<8x1xi32> to vector<8x128xi32>
    %15 = arith.cmpi eq, %1, %14 : vector<8x128xi32>
    %16 = arith.extui %15 : vector<8x128xi1> to vector<8x128xi32>
    %17 = arith.sitofp %16 : vector<8x128xi32> to vector<8x128xf32>
    %18 = arith.addf %12, %17 : vector<8x128xf32>
    %19 = vector.extract_strided_slice %0 {offsets = [0, 3], sizes = [8, 1], strides = [1, 1]} : vector<8x4xi32> to vector<8x1xi32>
    %20 = vector.broadcast %19 : vector<8x1xi32> to vector<8x128xi32>
    %21 = arith.cmpi eq, %1, %20 : vector<8x128xi32>
    %22 = arith.extui %21 : vector<8x128xi1> to vector<8x128xi32>
    %23 = arith.sitofp %22 : vector<8x128xi32> to vector<8x128xf32>
    %24 = arith.addf %18, %23 : vector<8x128xf32>
    %25 = arith.truncf %24 : vector<8x128xf32> to vector<8x128xbf16>
    %c0_1 = arith.constant 0 : index
    %c0_2 = arith.constant 0 : index
    %26 = vector.load %arg2[%c0_1, %c0_2] : memref<128x128xbf16, #tpu.memory_space<vmem>>, vector<128x128xbf16>
    %cst = arith.constant dense<0.000000e+00> : vector<8x128xf32>
    %27 = tpu.matmul %25, %26, %cst {dimension_numbers = #tpu.dot_dimension_numbers<[1], [0], [0], [1], [0, 0, 1, 1], [], []>} : vector<8x128xbf16>, vector<128x128xbf16>, vector<8x128xf32> -> vector<8x128xf32>
    %c0_3 = arith.constant 0 : index
    %c0_4 = arith.constant 0 : index
    %28 = vector.load %arg3[%c0_3, %c0_4] : memref<1x128xf32, #tpu.memory_space<vmem>>, vector<1x128xf32>
    %29 = vector.broadcast %28 : vector<1x128xf32> to vector<8x128xf32>
    %30 = arith.addf %27, %29 : vector<8x128xf32>
    %cst_5 = arith.constant dense<0xFF800000> : vector<8xf32>
    %31 = vector.multi_reduction <maximumf>, %30, %cst_5 [1] : vector<8x128xf32> to vector<8xf32>
    %32 = vector.shape_cast %31 : vector<8xf32> to vector<8x1xf32>
    %33 = vector.broadcast %32 : vector<8x1xf32> to vector<8x128xf32>
    %34 = arith.subf %30, %33 : vector<8x128xf32>
    %35 = math.exp %34 : vector<8x128xf32>
    %cst_6 = arith.constant dense<0.000000e+00> : vector<8xf32>
    %36 = vector.multi_reduction <add>, %35, %cst_6 [1] : vector<8x128xf32> to vector<8xf32>
    %37 = vector.shape_cast %36 : vector<8xf32> to vector<8x1xf32>
    %38 = tpu.reciprocal %37 {approx = true} : vector<8x1xf32> -> vector<8x1xf32>
    %39 = vector.broadcast %38 : vector<8x1xf32> to vector<8x128xf32>
    %40 = arith.mulf %35, %39 : vector<8x128xf32>
    %c0_7 = arith.constant 0 : index
    %c0_8 = arith.constant 0 : index
    %41 = vector.load %arg4[%c0_7, %c0_8] : memref<8x128xf32, #tpu.memory_space<vmem>>, vector<8x128xf32>
    tpu.vector_store %arg4[%c0_7, %c0_8], %40 {strides = array<i32>} : memref<8x128xf32, #tpu.memory_space<vmem>>, vector<8x128xf32>,
    return
  }
  func.func @transform_0(%arg0: i32) -> (i32, i32) {
    %c0_i32 = arith.constant 0 : i32
    %c0_i32_0 = arith.constant 0 : i32
    return %arg0, %c0_i32 : i32, i32
  }
  func.func @transform_1(%arg0: i32) -> (i32, i32) {
    %c0_i32 = arith.constant 0 : i32
    %c0_i32_0 = arith.constant 0 : i32
    %c0_i32_1 = arith.constant 0 : i32
    return %c0_i32, %c0_i32_0 : i32, i32
  }
  func.func @transform_2(%arg0: i32) -> (i32, i32) {
    %c0_i32 = arith.constant 0 : i32
    %c0_i32_0 = arith.constant 0 : i32
    %c0_i32_1 = arith.constant 0 : i32
    return %c0_i32, %c0_i32_0 : i32, i32
  }
  func.func @transform_3(%arg0: i32) -> (i32, i32) {
    %c0_i32 = arith.constant 0 : i32
    %c0_i32_0 = arith.constant 0 : i32
    return %arg0, %c0_i32 : i32, i32
  }
}

</mosaic_0001>

<llo_original>
// kernel: tpu_custom_call.1
$region0: #{tpu_custom_call.1}
  #allocation0 [shape = 'u32[]', space=smem, size = 0x4, offset = 0x4, fixed_abs, tag = 'smem constant byte address 0x4 - core index']
  #allocation1 [shape = 'u32[144,128]{1,0:T(1,128)}', space=vmem, size = 0x12000, scoped, tag = 'internal scratch']
  %s0 = inlined_call_operand.vmem [shape: s32[16,4], index: 0, kind: input, shape index: {}]
  %s1 = inlined_call_operand.hbm [shape: bf16[128,128], index: 1, kind: input, shape index: {}]
  %s2 = inlined_call_operand.vmem [shape: f32[1,128], index: 2, kind: input, shape index: {}]
  %s3 = inlined_call_operand.hbm [shape: f32[16,128], index: 3, kind: output, shape index: {}]
  %s4 = sld [smem:[#allocation0]]
  $region49: #{tpu_custom_call.1} parent=0
    _
  %s6 = ssub.s32 1, %s4
  %s7 = scalar_select 0, %s6, %s4
  $region1: #{tpu_custom_call.1} parent=0
    #allocation2 [shape = 'u8[32768]{0}', space=vmem, size = 0x8000, scoped, tag = 'input window, operand 1, single buffered']
    #allocation3 [shape = 's32[2]{0}', space=sflag, size = 0x8, scoped, tag = 'scoped memory for tpu_custom_call.1']
    #allocation4 [shape = 's32[2]{0}', space=sflag, size = 0x8, scoped, tag = 'scoped memory for tpu_custom_call.1']
    #allocation5 [shape = 'u8[8192]{0}', space=vmem, size = 0x2000, scoped, tag = 'output window, operand 0']
    %8 = vsyncpa [#allocation3], 0
    %9 = vsyncpa [#allocation4], 0
    %s10 = scalar_lea.sflag [#allocation4], 1
    %11 = vsyncpa %s10, 0
    loop: start=0, step=1, limit=4
    $region2: #{tpu_custom_call.1} parent=1 // loop_pre_header
      _
    $region3: #{tpu_custom_call.1} parent=1 // loop_header
      %s13 = sphi 0, %s17
      %p14 = scmp.ge.s32.totalorder %s13, 4
      %s23 = sphi 0, %s25
      %s26 = sphi 0, %s23
      %s27 = sphi 0, %s26
      %s43 = sphi 0, %s27
      %s47 = sphi 0, %s47
      %s49 = sphi 0, %s47
      %s50 = sphi 0, %s49
      %s64 = sphi 0, %s50
      %s68 = sphi 0, %s68
      %s70 = sphi 0, %s68
      %s71 = sphi 0, %s70
      %s85 = sphi 0, %s71
      %s91 = sphi 0, %s93
      %s94 = sphi 0, %s91
      %s95 = sphi 0, %s94
      %s111 = sphi 0, %s95
    $region4: #{tpu_custom_call.1} parent=1 // loop_header_branch
      %16 = sbr.rel (%p14) target = $region8
    $region5: #{tpu_custom_call.1} parent=1 // loop_body
      %s18 = ssub.s32 %s13, 1
      %s19 = ssub.s32 %s13, 2
      %s20 = sadd.s32 %s13, 1
      %s21 = ssub.s32 %s13, %s20
      %p22 = scmp.eq.s32.totalorder %s21, 0
      %s24 = sadd.s32 %s23, 1
      %s25 = scalar_select %p22, %s23, %s24
      %p28 = pneg %p22
      %p29 = scmp.eq.s32.totalorder %s13, 1
      %p30 = por %p28, %p29
      %p31 = scmp.ne.s32.totalorder %s23, %s26
      %p32 = scmp.eq.s32.totalorder %s13, 0
      %p33 = por %p31, %p32
      %p34 = scmp.ne.s32.totalorder %s23, %s26
      %p35 = scmp.eq.s32.totalorder %s18, 1
      %p36 = por %p34, %p35
      %p37 = scmp.ne.s32.totalorder %s26, %s27
      %p38 = scmp.eq.s32.totalorder %s18, 0
      %p39 = por %p37, %p38
      %p40 = scmp.ne.s32.totalorder %s26, %s27
      %p41 = scmp.eq.s32.totalorder %s19, 1
      %p42 = por %p40, %p41
      %p44 = scmp.ne.s32.totalorder %s27, %s43
      %p45 = scmp.eq.s32.totalorder %s19, 0
      %p46 = por %p44, %p45
      %s48 = sadd.s32 %s47, 1
      %p51 = scmp.eq.s32.totalorder %s13, 1
      %p52 = scmp.ne.s32.totalorder %s47, %s49
      %p53 = scmp.eq.s32.totalorder %s13, 0
      %p54 = por %p52, %p53
      %p55 = scmp.ne.s32.totalorder %s47, %s49
      %p56 = scmp.eq.s32.totalorder %s18, 1
      %p57 = por %p55, %p56
      %p58 = scmp.ne.s32.totalorder %s49, %s50
      %p59 = scmp.eq.s32.totalorder %s18, 0
      %p60 = por %p58, %p59
      %p61 = scmp.ne.s32.totalorder %s49, %s50
      %p62 = scmp.eq.s32.totalorder %s19, 1
      %p63 = por %p61, %p62
      %p65 = scmp.ne.s32.totalorder %s50, %s64
      %p66 = scmp.eq.s32.totalorder %s19, 0
      %p67 = por %p65, %p66
      %s69 = sadd.s32 %s68, 1
      %p72 = scmp.eq.s32.totalorder %s13, 1
      %p73 = scmp.ne.s32.totalorder %s68, %s70
      %p74 = scmp.eq.s32.totalorder %s13, 0
      %p75 = por %p73, %p74
      %p76 = scmp.ne.s32.totalorder %s68, %s70
      %p77 = scmp.eq.s32.totalorder %s18, 1
      %p78 = por %p76, %p77
      %p79 = scmp.ne.s32.totalorder %s70, %s71
      %p80 = scmp.eq.s32.totalorder %s18, 0
      %p81 = por %p79, %p80
      %p82 = scmp.ne.s32.totalorder %s70, %s71
      %p83 = scmp.eq.s32.totalorder %s19, 1
      %p84 = por %p82, %p83
      %p86 = scmp.ne.s32.totalorder %s71, %s85
      %p87 = scmp.eq.s32.totalorder %s19, 0
      %p88 = por %p86, %p87
      %s89 = ssub.s32 %s13, %s20
      %p90 = scmp.eq.s32.totalorder %s89, 0
      %s92 = sadd.s32 %s91, 1
      %s93 = scalar_select %p90, %s91, %s92
      %p96 = pneg %p90
      %p97 = scmp.eq.s32.totalorder %s13, 1
      %p98 = por %p96, %p97
      %p99 = scmp.ne.s32.totalorder %s91, %s94
      %p100 = scmp.eq.s32.totalorder %s13, 0
      %p101 = por %p99, %p100
      %p102 = scmp.ne.s32.totalorder %s91, %s94
      %p103 = scmp.eq.s32.totalorder %s18, 1
      %p104 = por %p102, %p103
      %p105 = scmp.ne.s32.totalorder %s94, %s95
      %p106 = scmp.eq.s32.totalorder %s18, 0
      %p107 = por %p105, %p106
      %p108 = scmp.ne.s32.totalorder %s94, %s95
      %p109 = scmp.eq.s32.totalorder %s19, 1
      %p110 = por %p108, %p109
      %p112 = scmp.ne.s32.totalorder %s95, %s111
      %p113 = scmp.eq.s32.totalorder %s19, 0
      %p114 = por %p112, %p113
      %p115 = scmp.le.s32.totalorder 1, %s13
      %p116 = scmp.lt.s32.totalorder %s13, 3
      %p117 = pnand %p115, %p116
      %p118 = pneg %p117
      // Predicated region
      $region9: #{tpu_custom_call.1} parent=5 // pred_check
        _
      $region10: #{tpu_custom_call.1} parent=5 // pred_check_branch
        %120 = sbr.rel (%p117) target = $region12
      $region11: #{tpu_custom_call.1} parent=5 // pred_region
        %s121 = ssub.s32 %s13, 1
        // Predicated region
        $region13: #{tpu_custom_call.1} parent=11 // pred_check
          %p122 = pneg %p60
        $region14: #{tpu_custom_call.1} parent=11 // pred_check_branch
          %124 = sbr.rel (%p122) target = $region16
        $region15: #{tpu_custom_call.1} parent=11 // pred_region
          %s126 = ssub.s32 1024, 1024
          %127 = vsyncadd [#allocation3], %s126
          %s128 = sshll.u32 [#allocation2], 4
          %s129 = int_to_ptr.vmem [resolvable:$true] %s128
          %134 = dma.hbm_to_vmem [thread:$0]  %s1, 1024, %s129, [#allocation3], 64, 64, 4
        $region16: #{tpu_custom_call.1} parent=11 // pred_fallthru
          _
        // Predicated region
        $region17: #{tpu_custom_call.1} parent=11 // pred_check
          %p135 = pneg %p81
        $region18: #{tpu_custom_call.1} parent=11 // pred_check_branch
          %137 = sbr.rel (%p135) target = $region20
        $region19: #{tpu_custom_call.1} parent=11 // pred_region
          _
        $region20: #{tpu_custom_call.1} parent=11 // pred_fallthru
          _
      $region12: #{tpu_custom_call.1} parent=5 // pred_fallthru
        _
      %p138 = scmp.lt.s32.totalorder %s13, 2
      // Predicated region
      $region21: #{tpu_custom_call.1} parent=5 // pred_check
        %p139 = pneg %p138
      $region22: #{tpu_custom_call.1} parent=5 // pred_check_branch
        %141 = sbr.rel (%p139) target = $region24
      $region23: #{tpu_custom_call.1} parent=5 // pred_region
        // Predicated region
        $region25: #{tpu_custom_call.1} parent=23 // pred_check
          %p142 = pneg %p33
        $region26: #{tpu_custom_call.1} parent=23 // pred_check_branch
          %144 = sbr.rel (%p142) target = $region28
        $region27: #{tpu_custom_call.1} parent=23 // pred_region
          %p145 = scmp.lt.s32.totalorder %s13, 1
          %s146 = scalar_select %p145, %s13, 1
          %s147 = smul.addr %s146, 8
          %s148 = scalar_lea.vmem %s0, %s147
        $region28: #{tpu_custom_call.1} parent=23 // pred_fallthru
          _
      $region24: #{tpu_custom_call.1} parent=5 // pred_fallthru
        _
      %p149 = scmp.le.s32.totalorder 1, %s13
      %p150 = scmp.lt.s32.totalorder %s13, 3
      %p151 = pnand %p149, %p150
      %p152 = pneg %p151
      // Predicated region
      $region29: #{tpu_custom_call.1} parent=5 // pred_check
        _
      $region30: #{tpu_custom_call.1} parent=5 // pred_check_branch
        %154 = sbr.rel (%p151) target = $region32
      $region31: #{tpu_custom_call.1} parent=5 // pred_region
        %s155 = ssub.s32 %s13, 1
        // Predicated region
        $region33: #{tpu_custom_call.1} parent=31 // pred_check
          %p156 = pneg %p60
        $region34: #{tpu_custom_call.1} parent=31 // pred_check_branch
          %158 = sbr.rel (%p156) target = $region36
        $region35: #{tpu_custom_call.1} parent=31 // pred_region
          %159 = dma.done [#allocation3], 1024
        $region36: #{tpu_custom_call.1} parent=31 // pred_fallthru
          _
        %p160 = scmp.lt.s32.totalorder %s18, 1
        %s161 = scalar_select %p160, %s18, 1
        %s162 = smul.addr %s161, 8
        %s163 = scalar_lea.vmem %s0, %s162
        %p164 = pneg %p39
        %p165 = pneg %p36
        %p166 = pneg %p60
        %p167 = pneg %p57
        %p168 = pneg %p81
        %p169 = pneg %p78
        %p170 = pneg %p107
        %p171 = pneg %p104
        %s172 = sand.u32 %s94, 1
        %s173 = scalar_lea.sflag [#allocation4], %s172
        %s174 = sand.u32 %s94, 1
        %s175 = smul.addr %s174, 8
        %s176 = scalar_lea.vmem [#allocation5], %s175
        %p177 = scmp.lt.s32.totalorder %s18, 1
        %s178 = scalar_select %p177, %s18, 1
        %s179 = smul.addr %s178, 8
        %s180 = scalar_lea.vmem %s0, %s179
        %v182 = vld [vmem:[%s180] sm:$0xff]
        %v183 = vlaneseq
        %v184 = vand.u32 %v183, 127
        %185 = vset.pattern.permute.xlu0 0
        %186 = vperm.xlu0 %185, %v182
        %v187 = vpop.permute.xlu0 %186
        %vm188 = vcmp.eq.s32.totalorder %v184, %v187
        %v189 = vsel %vm188, 1, 0
        %v190 = vcvt.s32.f32 %v189
        %191 = vset.pattern.permute.xlu0 1
        %192 = vperm.xlu0 %191, %v182
        %v193 = vpop.permute.xlu0 %192
        %vm194 = vcmp.eq.s32.totalorder %v184, %v193
        %v195 = vsel %vm194, 1, 0
        %v196 = vcvt.s32.f32 %v195
        %v197 = vadd.f32 %v190, %v196
        %198 = vset.pattern.permute.xlu0 2
        %199 = vperm.xlu0 %198, %v182
        %v200 = vpop.permute.xlu0 %199
        %vm201 = vcmp.eq.s32.totalorder %v184, %v200
        %v202 = vsel %vm201, 1, 0
        %v203 = vcvt.s32.f32 %v202
        %v204 = vadd.f32 %v197, %v203
        %205 = vset.pattern.permute.xlu0 3
        %206 = vperm.xlu0 %205, %v182
        %v207 = vpop.permute.xlu0 %206
        %vm208 = vcmp.eq.s32.totalorder %v184, %v207
        %v209 = vsel %vm208, 1, 0
        %v210 = vcvt.s32.f32 %v209
        %v211 = vadd.f32 %v204, %v210
        %v212 = vpack.c.bf16 %v211, %v211
        %v213 = vld [vmem:[#allocation2] sm:$0xf]
        %v214 = vld [vmem:[#allocation2 + $0x4] sm:$0xf]
        %v215 = vld [vmem:[#allocation2 + $0x8] sm:$0xf]
        %v216 = vld [vmem:[#allocation2 + $0xc] sm:$0xf]
        %v217 = vld [vmem:[#allocation2 + $0x10] sm:$0xf]
        %v218 = vld [vmem:[#allocation2 + $0x14] sm:$0xf]
        %v219 = vld [vmem:[#allocation2 + $0x18] sm:$0xf]
        %v220 = vld [vmem:[#allocation2 + $0x1c] sm:$0xf]
        %v221 = vld [vmem:[#allocation2 + $0x20] sm:$0xf]
        %v222 = vld [vmem:[#allocation2 + $0x24] sm:$0xf]
        %v223 = vld [vmem:[#allocation2 + $0x28] sm:$0xf]
        %v224 = vld [vmem:[#allocation2 + $0x2c] sm:$0xf]
        %v225 = vld [vmem:[#allocation2 + $0x30] sm:$0xf]
        %v226 = vld [vmem:[#allocation2 + $0x34] sm:$0xf]
        %v227 = vld [vmem:[#allocation2 + $0x38] sm:$0xf]
        %v228 = vld [vmem:[#allocation2 + $0x3c] sm:$0xf]
        %v229 = vld [vmem:[%s2] sm:$0x1]
        %v231 = vlaneseq
        %v232 = vshrl.u32 %v231, 7
        %v233 = vsub.s32 0, %v232
        %v234 = vrot.slane %v229, %v233
        %v252 = vunpack.c.l.b16 %v213
        %v253 = vunpack.c.l.b16 %v214
        %v254 = vunpack.c.l.b16 %v215
        %v255 = vunpack.c.l.b16 %v216
        %v256 = vunpack.c.l.b16 %v217
        %v257 = vunpack.c.l.b16 %v218
        %v258 = vunpack.c.l.b16 %v219
        %v259 = vunpack.c.l.b16 %v220
        %v260 = vunpack.c.l.b16 %v221
        %v261 = vunpack.c.l.b16 %v222
        %v262 = vunpack.c.l.b16 %v223
        %v263 = vunpack.c.l.b16 %v224
        %v264 = vunpack.c.l.b16 %v225
        %v265 = vunpack.c.l.b16 %v226
        %v266 = vunpack.c.l.b16 %v227
        %v267 = vunpack.c.l.b16 %v228
        %v268 = vpack.c.b16 %v253, %v252
        %v269 = vpack.c.b16 %v255, %v254
        %v270 = vpack.c.b16 %v257, %v256
        %v271 = vpack.c.b16 %v259, %v258
        %v272 = vpack.c.b16 %v261, %v260
        %v273 = vpack.c.b16 %v263, %v262
        %v274 = vpack.c.b16 %v265, %v264
        %v275 = vpack.c.b16 %v267, %v266
        %284 = vmatprep.subr.bf16.mxu0 0
        %285 = vmatpush1.bf16.msra.mxu0 %v268
        %286 = vmatprep.subr.bf16.mxu0 0
        %287 = vmatpush1.bf16.msra.mxu0 %v269
        %288 = vmatprep.subr.bf16.mxu0 0
        %289 = vmatpush1.bf16.msra.mxu0 %v270
        %290 = vmatprep.subr.bf16.mxu0 0
        %291 = vmatpush1.bf16.msra.mxu0 %v271
        %292 = vmatprep.subr.bf16.mxu0 0
        %293 = vmatpush1.bf16.msra.mxu0 %v272
        %294 = vmatprep.subr.bf16.mxu0 0
        %295 = vmatpush1.bf16.msra.mxu0 %v273
        %296 = vmatprep.subr.bf16.mxu0 0
        %297 = vmatpush1.bf16.msra.mxu0 %v274
        %298 = vmatprep.subr.bf16.mxu0 0
        %299 = vmatpush1.bf16.msra.mxu0 %v275
        %300 = vmatprep.subr.bf16.mxu0 0
        %301 = vmatpush1.bf16.msra.mxu0 0
        %302 = vmatprep.subr.bf16.mxu0 0
        %303 = vmatpush1.bf16.msra.mxu0 0
        %304 = vmatprep.subr.bf16.mxu0 0
        %305 = vmatpush1.bf16.msra.mxu0 0
        %306 = vmatprep.subr.bf16.mxu0 0
        %307 = vmatpush1.bf16.msra.mxu0 0
        %308 = vmatprep.subr.bf16.mxu0 0
        %309 = vmatpush1.bf16.msra.mxu0 0
        %310 = vmatprep.subr.bf16.mxu0 0
        %311 = vmatpush1.bf16.msra.mxu0 0
        %312 = vmatprep.subr.bf16.mxu0 0
        %313 = vmatpush1.bf16.msra.mxu0 0
        %314 = vmatprep.subr.bf16.mxu0 0
        %315 = vmatpush1.bf16.msra.mxu0 0
        %316 = vmatprep.mubr.bf16.mxu0 0
        %317 = vmatmul.mubr.bf16.gmra.mrb[0].mxu0 %v212
        %v318 = vpop.f32.mrb[0].mxu0
        %v319 = vadd.f32 %v234, %v318
        %v320 = vpop.f32.mrb[0].mxu0
        %v321 = vpop.f32.mrb[0].mxu0
        %v322 = vpop.f32.mrb[0].mxu0
        %323 = vdwg.mxu0
        %324 = vmax.xlane.f32.xlu0 %v319
        %v325 = vpop.xlane.xlu0 %324
        %v326 = vsub.f32 %v319, %v325
        %v327 = vmul.f32 %v326, 1.442695
        %v328 = vpow.pop %v327
        %329 = vadd.xlane.f32.xlu0 %v328
        %v330 = vpop.xlane.xlu0 %329
        %v331 = vrcp.pop %v330
        %v332 = vmul.f32 %v328, %v331
        %333 = vst [vmem:[%s176] sm:$0xff] %v332
        %s334 = sand.u32 %s94, 1
        %s335 = scalar_lea.sflag [#allocation4], %s334
        %s336 = sand.u32 %s94, 1
        %s337 = smul.addr %s336, 8
        %s338 = scalar_lea.vmem [#allocation5], %s337
        // Predicated region
        $region37: #{tpu_custom_call.1} parent=31 // pred_check
          %p339 = pneg %p104
        $region38: #{tpu_custom_call.1} parent=31 // pred_check_branch
          %341 = sbr.rel (%p339) target = $region40
        $region39: #{tpu_custom_call.1} parent=31 // pred_region
          %s343 = ssub.s32 128, 128
          %344 = vsyncadd %s335, %s343
          %s345 = smul.addr %s18, 128
          %s346 = scalar_lea.hbm %s3, %s345
          %s348 = sshll.u32 %s338, 4
          %s349 = int_to_ptr.vmem [resolvable:$true] %s348
          %351 = dma.vmem_to_hbm [thread:$0]  %s349, 128, %s346, %s335
        $region40: #{tpu_custom_call.1} parent=31 // pred_fallthru
          _
      $region32: #{tpu_custom_call.1} parent=5 // pred_fallthru
        _
      %p352 = scmp.le.s32.totalorder 2, %s13
      // Predicated region
      $region41: #{tpu_custom_call.1} parent=5 // pred_check
        %p353 = pneg %p352
      $region42: #{tpu_custom_call.1} parent=5 // pred_check_branch
        %355 = sbr.rel (%p353) target = $region44
      $region43: #{tpu_custom_call.1} parent=5 // pred_region
        %s356 = ssub.s32 %s13, 2
        // Predicated region
        $region45: #{tpu_custom_call.1} parent=43 // pred_check
          %p357 = pneg %p110
        $region46: #{tpu_custom_call.1} parent=43 // pred_check_branch
          %359 = sbr.rel (%p357) target = $region48
        $region47: #{tpu_custom_call.1} parent=43 // pred_region
          %s360 = sand.u32 %s95, 1
          %s361 = scalar_lea.sflag [#allocation4], %s360
          %s362 = sand.u32 %s95, 1
          %s363 = smul.addr %s362, 8
          %s364 = scalar_lea.vmem [#allocation5], %s363
          %365 = dma.done %s361, 128
        $region48: #{tpu_custom_call.1} parent=43 // pred_fallthru
          _
      $region44: #{tpu_custom_call.1} parent=5 // pred_fallthru
        _
    $region6: #{tpu_custom_call.1} parent=1 // loop_footer
      %s17 = sadd.s32 1, %s13
    $region7: #{tpu_custom_call.1} parent=1 // loop_footer_branch
      %12 = sbr.rel target = $region3
    $region8: #{tpu_custom_call.1} parent=1 // loop_exit
      _
    %366 = vsyncpa [#allocation3], 1
    %s367 = scalar_lea.sflag [#allocation3], 1
    %368 = vsyncpa %s367, 1
    %369 = vsyncpa [#allocation4], 1
    %s370 = scalar_lea.sflag [#allocation4], 1
    %371 = vsyncpa %s370, 1

</llo_original>
